<compile_context>
chip_gen: v6e
topology: v6e:2x2x1
jax: 0.10.0
libtpu: 0.0.40
codegen_flags: <defaults>
</compile_context>

<pallas_src>
import numpy as np
import jax
import jax.numpy as jnp
from jax.experimental import pallas as pl
from jax.experimental.pallas import tpu as pltpu


# --------------------------------------------------------------------------
# Pallas kernel: fused  out = (x @ W1 + b1) @ W2 + b2
#   x:[TM, In]  w1:[In, H]  b1:[1, H]  w2:[H, O]  b2:[1, O]  ->  o:[TM, O]
# The fc1 activation `h` stays entirely in VMEM / vregs.
# --------------------------------------------------------------------------
def _forwardnet_kernel(x_ref, w1_ref, b1_ref, w2_ref, b2_ref, o_ref):
    h = jnp.dot(x_ref[...], w1_ref[...], preferred_element_type=jnp.float32)
    h = h + b1_ref[...]
    out = jnp.dot(h, w2_ref[...], preferred_element_type=jnp.float32)
    o_ref[...] = out + b2_ref[...]


# --------------------------------------------------------------------------
# Wrapper: takes PyTorch-layout parameters
#   w1:[fc_hidden, in_size] b1:[fc_hidden]  w2:[out_size, fc_hidden] b2:[out_size]
# --------------------------------------------------------------------------
def forward_net(x, w1, b1, w2, b2, *, tile_m=128):
    B, in_size = x.shape
    H = w1.shape[0]          # fc_hidden = 256
    O = w2.shape[0]          # out_size  = 288

    # Pad the batch (sublane/MXU-row dim) up to a multiple of 8; tile at 128 rows
    # with a parallel grid axis when the batch is large.
    if B > tile_m:
        tm = tile_m
    else:
        tm = max(8, -(-B // 8) * 8)
    Bp = -(-B // tm) * tm
    xp = x if Bp == B else jnp.pad(x, ((0, Bp - B), (0, 0)))

    # Pre-pack weights once: [K, N] layout so the contraction axis feeds lanes.
    w1t = w1.T                      # [in_size, H]
    w2t = w2.T                      # [H, O]
    b1r = b1.reshape(1, H)
    b2r = b2.reshape(1, O)

    out = pl.pallas_call(
        _forwardnet_kernel,
        out_shape=jax.ShapeDtypeStruct((Bp, O), jnp.float32),
        grid_spec=pltpu.PrefetchScalarGridSpec(
            num_scalar_prefetch=0,
            grid=(Bp // tm,),
            in_specs=[
                pl.BlockSpec((tm, in_size), lambda i: (i, 0)),
                pl.BlockSpec((in_size, H), lambda i: (0, 0)),
                pl.BlockSpec((1, H), lambda i: (0, 0)),
                pl.BlockSpec((H, O), lambda i: (0, 0)),
                pl.BlockSpec((1, O), lambda i: (0, 0)),
            ],
            out_specs=pl.BlockSpec((tm, O), lambda i: (i, 0)),
        ),
        compiler_params=pltpu.CompilerParams(
            dimension_semantics=("parallel",)),
    )(xp, w1t, b1r, w2t, b2r)

    return out[:B]


# --------------------------------------------------------------------------
# Deterministic parameter construction (mirrors ForwardNet.__init__):
#   fc1 = Linear(in_size, 256), fc2 = Linear(256, 288)
#   weights: orthogonal_ (gain=1), biases: constant 0
# --------------------------------------------------------------------------
def make_params(key, in_size, fc_hidden=256, out_size=288):
    ortho = jax.nn.initializers.orthogonal()
    k1, k2 = jax.random.split(key)
    w1 = ortho(k1, (fc_hidden, in_size), jnp.float32)
    b1 = jnp.zeros((fc_hidden,), jnp.float32)
    w2 = ortho(k2, (out_size, fc_hidden), jnp.float32)
    b2 = jnp.zeros((out_size,), jnp.float32)
    return w1, b1, w2, b2


# --------------------------------------------------------------------------
# Pure-JAX reference (correctness check only)
# --------------------------------------------------------------------------
def reference_forward(x, w1, b1, w2, b2):
    h = x @ w1.T + b1
    return h @ w2.T + b2


# --------------------------------------------------------------------------
if __name__ == "__main__":
    # ForwardNet input is cat(phi(s_t), a_t):
    #   feature space size = 288 (matches out_size), small action space = 4
    #   -> in_size = 292.  Small batch of 2.
    B = 2
    feature_size, action_size = 288, 4
    in_size = feature_size + action_size

    key = jax.random.PRNGKey(0)
    key, kx = jax.random.split(key)
    x = jax.random.normal(kx, (B, in_size), jnp.float32)

    w1, b1, w2, b2 = make_params(key, in_size)

    out = forward_net(x, w1, b1, w2, b2)
    out = jax.block_until_ready(out)

    ref = reference_forward(x, w1, b1, w2, b2)
    # Tolerance accounts for default (non-HIGHEST) MXU precision, per perf review.
    if not np.allclose(np.asarray(out), np.asarray(ref), rtol=2e-2, atol=2e-2):
        raise AssertionError("Pallas ForwardNet mismatch vs JAX reference")

    print("KERNEL_OK")
</pallas_src>

<mosaic_0001>
module attributes {stable_mosaic.version = 11 : i64} {
  func.func @_forwardnet_kernel(%arg0: i32, %arg1: memref<8x292xf32, #tpu.memory_space<vmem>>, %arg2: memref<292x256xf32, #tpu.memory_space<vmem>>, %arg3: memref<1x256xf32, #tpu.memory_space<vmem>>, %arg4: memref<256x288xf32, #tpu.memory_space<vmem>>, %arg5: memref<1x288xf32, #tpu.memory_space<vmem>>, %arg6: memref<8x288xf32, #tpu.memory_space<vmem>>) attributes {dimension_semantics = [#tpu.dimension_semantics<parallel>], iteration_bounds = array<i64: 1>, scalar_prefetch = 0 : i64, scratch_operands = 0 : i64, tpu.core_type = #tpu.core_type<tc>, window_params = [{transform_indices = @transform_0, window_bounds = array<i64: 8, 292>}, {pipeline_mode = #tpu.pipeline_mode<synchronous>, transform_indices = @transform_1, window_bounds = array<i64: 292, 256>}, {pipeline_mode = #tpu.pipeline_mode<synchronous>, transform_indices = @transform_2, window_bounds = array<i64: 1, 256>}, {pipeline_mode = #tpu.pipeline_mode<synchronous>, transform_indices = @transform_3, window_bounds = array<i64: 256, 288>}, {pipeline_mode = #tpu.pipeline_mode<synchronous>, transform_indices = @transform_4, window_bounds = array<i64: 1, 288>}, {transform_indices = @transform_5, window_bounds = array<i64: 8, 288>}]} {
    %c0 = arith.constant 0 : index
    %c0_0 = arith.constant 0 : index
    %0 = vector.load %arg1[%c0, %c0_0] : memref<8x292xf32, #tpu.memory_space<vmem>>, vector<8x292xf32>
    %c0_1 = arith.constant 0 : index
    %c0_2 = arith.constant 0 : index
    %1 = vector.load %arg2[%c0_1, %c0_2] : memref<292x256xf32, #tpu.memory_space<vmem>>, vector<292x256xf32>
    %cst = arith.constant dense<0.000000e+00> : vector<8x256xf32>
    %2 = tpu.matmul %0, %1, %cst {dimension_numbers = #tpu.dot_dimension_numbers<[1], [0], [0], [1], [0, 0, 1, 1], [], []>} : vector<8x292xf32>, vector<292x256xf32>, vector<8x256xf32> -> vector<8x256xf32>
    %c0_3 = arith.constant 0 : index
    %c0_4 = arith.constant 0 : index
    %3 = vector.load %arg3[%c0_3, %c0_4] : memref<1x256xf32, #tpu.memory_space<vmem>>, vector<1x256xf32>
    %4 = vector.broadcast %3 : vector<1x256xf32> to vector<8x256xf32>
    %5 = arith.addf %2, %4 : vector<8x256xf32>
    %c0_5 = arith.constant 0 : index
    %c0_6 = arith.constant 0 : index
    %6 = vector.load %arg4[%c0_5, %c0_6] : memref<256x288xf32, #tpu.memory_space<vmem>>, vector<256x288xf32>
    %cst_7 = arith.constant dense<0.000000e+00> : vector<8x288xf32>
    %7 = tpu.matmul %5, %6, %cst_7 {dimension_numbers = #tpu.dot_dimension_numbers<[1], [0], [0], [1], [0, 0, 1, 1], [], []>} : vector<8x256xf32>, vector<256x288xf32>, vector<8x288xf32> -> vector<8x288xf32>
    %c0_8 = arith.constant 0 : index
    %c0_9 = arith.constant 0 : index
    %8 = vector.load %arg5[%c0_8, %c0_9] : memref<1x288xf32, #tpu.memory_space<vmem>>, vector<1x288xf32>
    %9 = vector.broadcast %8 : vector<1x288xf32> to vector<8x288xf32>
    %10 = arith.addf %7, %9 : vector<8x288xf32>
    %c0_10 = arith.constant 0 : index
    %c0_11 = arith.constant 0 : index
    %11 = vector.load %arg6[%c0_10, %c0_11] : memref<8x288xf32, #tpu.memory_space<vmem>>, vector<8x288xf32>
    tpu.vector_store %arg6[%c0_10, %c0_11], %10 {strides = array<i32>} : memref<8x288xf32, #tpu.memory_space<vmem>>, vector<8x288xf32>,
    return
  }
  func.func @transform_0(%arg0: i32) -> (i32, i32) {
    %c0_i32 = arith.constant 0 : i32
    %c0_i32_0 = arith.constant 0 : i32
    return %arg0, %c0_i32 : i32, i32
  }
  func.func @transform_1(%arg0: i32) -> (i32, i32) {
    %c0_i32 = arith.constant 0 : i32
    %c0_i32_0 = arith.constant 0 : i32
    %c0_i32_1 = arith.constant 0 : i32
    return %c0_i32, %c0_i32_0 : i32, i32
  }
  func.func @transform_2(%arg0: i32) -> (i32, i32) {
    %c0_i32 = arith.constant 0 : i32
    %c0_i32_0 = arith.constant 0 : i32
    %c0_i32_1 = arith.constant 0 : i32
    return %c0_i32, %c0_i32_0 : i32, i32
  }
  func.func @transform_3(%arg0: i32) -> (i32, i32) {
    %c0_i32 = arith.constant 0 : i32
    %c0_i32_0 = arith.constant 0 : i32
    %c0_i32_1 = arith.constant 0 : i32
    return %c0_i32, %c0_i32_0 : i32, i32
  }
  func.func @transform_4(%arg0: i32) -> (i32, i32) {
    %c0_i32 = arith.constant 0 : i32
    %c0_i32_0 = arith.constant 0 : i32
    %c0_i32_1 = arith.constant 0 : i32
    return %c0_i32, %c0_i32_0 : i32, i32
  }
  func.func @transform_5(%arg0: i32) -> (i32, i32) {
    %c0_i32 = arith.constant 0 : i32
    %c0_i32_0 = arith.constant 0 : i32
    return %arg0, %c0_i32 : i32, i32
  }
}

</mosaic_0001>

<llo_original>
// kernel: tpu_custom_call.1
$region0: #{tpu_custom_call.1}
  #allocation0 [shape = 'u32[]', space=smem, size = 0x4, offset = 0x4, fixed_abs, tag = 'smem constant byte address 0x4 - core index']
  #allocation1 [shape = 'u32[144,128]{1,0:T(1,128)}', space=vmem, size = 0x12000, scoped, tag = 'internal scratch']
  %s0 = inlined_call_operand.vmem [shape: f32[8,292], index: 0, kind: input, shape index: {}]
  %s1 = inlined_call_operand.vmem [shape: f32[292,256], index: 1, kind: input, shape index: {}]
  %s2 = inlined_call_operand.vmem [shape: f32[1,256], index: 2, kind: input, shape index: {}]
  %s3 = inlined_call_operand.vmem [shape: f32[256,288], index: 3, kind: input, shape index: {}]
  %s4 = inlined_call_operand.vmem [shape: f32[1,288], index: 4, kind: input, shape index: {}]
  %s5 = inlined_call_operand.hbm [shape: f32[8,288], index: 5, kind: output, shape index: {}]
  %s6 = sld [smem:[#allocation0]]
  $region30: #{tpu_custom_call.1} parent=0
    _
  %s8 = ssub.s32 1, %s6
  %s9 = scalar_select 0, %s8, %s6
  $region1: #{tpu_custom_call.1} parent=0
    #allocation2 [shape = 'u8[12288]{0}', space=vmem, size = 0x3000, scoped, tag = 'output window, operand 0, single buffered']
    #allocation3 [shape = 's32[1]{0}', space=sflag, size = 0x4, scoped, tag = 'scoped memory for tpu_custom_call.1']
    %10 = vsyncpa [#allocation3], 0
    // Predicated region
    $region2: #{tpu_custom_call.1} parent=1 // pred_check
      _
    $region3: #{tpu_custom_call.1} parent=1 // pred_check_branch
      %12 = sbr.rel (0) target = $region5
    $region4: #{tpu_custom_call.1} parent=1 // pred_region
      _
    $region5: #{tpu_custom_call.1} parent=1 // pred_fallthru
      _
    // Predicated region
    $region6: #{tpu_custom_call.1} parent=1 // pred_check
      _
    $region7: #{tpu_custom_call.1} parent=1 // pred_check_branch
      %14 = sbr.rel (0) target = $region9
    $region8: #{tpu_custom_call.1} parent=1 // pred_region
      _
    $region9: #{tpu_custom_call.1} parent=1 // pred_fallthru
      _
    // Predicated region
    $region10: #{tpu_custom_call.1} parent=1 // pred_check
      _
    $region11: #{tpu_custom_call.1} parent=1 // pred_check_branch
      %16 = sbr.rel (0) target = $region13
    $region12: #{tpu_custom_call.1} parent=1 // pred_region
      _
    $region13: #{tpu_custom_call.1} parent=1 // pred_fallthru
      _
    // Predicated region
    $region14: #{tpu_custom_call.1} parent=1 // pred_check
      _
    $region15: #{tpu_custom_call.1} parent=1 // pred_check_branch
      %18 = sbr.rel (0) target = $region17
    $region16: #{tpu_custom_call.1} parent=1 // pred_region
      _
    $region17: #{tpu_custom_call.1} parent=1 // pred_fallthru
      _
    // Predicated region
    $region18: #{tpu_custom_call.1} parent=1 // pred_check
      _
    $region19: #{tpu_custom_call.1} parent=1 // pred_check_branch
      %20 = sbr.rel (0) target = $region21
    $region20: #{tpu_custom_call.1} parent=1 // pred_region
      _
    $region21: #{tpu_custom_call.1} parent=1 // pred_fallthru
      _
    %v21 = vld [vmem:[%s0] sm:$0xff]
    %v22 = vld [vmem:[%s0 + $0x8] sm:$0xff]
    %v23 = vld [vmem:[%s0 + $0x10] sm:$0xff]
    %v24 = vld [vmem:[%s1] sm:$0xff]
    %v25 = vld [vmem:[%s1 + $0x8] sm:$0xff]
    %v26 = vld [vmem:[%s1 + $0x10] sm:$0xff]
    %v27 = vld [vmem:[%s1 + $0x18] sm:$0xff]
    %v28 = vld [vmem:[%s1 + $0x20] sm:$0xff]
    %v29 = vld [vmem:[%s1 + $0x28] sm:$0xff]
    %v30 = vld [vmem:[%s1 + $0x30] sm:$0xff]
    %v31 = vld [vmem:[%s1 + $0x38] sm:$0xff]
    %v32 = vld [vmem:[%s1 + $0x40] sm:$0xff]
    %v33 = vld [vmem:[%s1 + $0x48] sm:$0xff]
    %v34 = vld [vmem:[%s1 + $0x50] sm:$0xff]
    %v35 = vld [vmem:[%s1 + $0x58] sm:$0xff]
    %v36 = vld [vmem:[%s1 + $0x60] sm:$0xff]
    %v37 = vld [vmem:[%s1 + $0x68] sm:$0xff]
    %v38 = vld [vmem:[%s1 + $0x70] sm:$0xff]
    %v39 = vld [vmem:[%s1 + $0x78] sm:$0xff]
    %v40 = vld [vmem:[%s1 + $0x80] sm:$0xff]
    %v41 = vld [vmem:[%s1 + $0x88] sm:$0xff]
    %v42 = vld [vmem:[%s1 + $0x90] sm:$0xff]
    %v43 = vld [vmem:[%s1 + $0x98] sm:$0xff]
    %v44 = vld [vmem:[%s1 + $0xa0] sm:$0xff]
    %v45 = vld [vmem:[%s1 + $0xa8] sm:$0xff]
    %v46 = vld [vmem:[%s1 + $0xb0] sm:$0xff]
    %v47 = vld [vmem:[%s1 + $0xb8] sm:$0xff]
    %v48 = vld [vmem:[%s1 + $0xc0] sm:$0xff]
    %v49 = vld [vmem:[%s1 + $0xc8] sm:$0xff]
    %v50 = vld [vmem:[%s1 + $0xd0] sm:$0xff]
    %v51 = vld [vmem:[%s1 + $0xd8] sm:$0xff]
    %v52 = vld [vmem:[%s1 + $0xe0] sm:$0xff]
    %v53 = vld [vmem:[%s1 + $0xe8] sm:$0xff]
    %v54 = vld [vmem:[%s1 + $0xf0] sm:$0xff]
    %v55 = vld [vmem:[%s1 + $0xf8] sm:$0xff]
    %v56 = vld [vmem:[%s1 + $0x100] sm:$0xff]
    %v57 = vld [vmem:[%s1 + $0x108] sm:$0xff]
    %v58 = vld [vmem:[%s1 + $0x110] sm:$0xff]
    %v59 = vld [vmem:[%s1 + $0x118] sm:$0xff]
    %v60 = vld [vmem:[%s1 + $0x120] sm:$0xff]
    %v61 = vld [vmem:[%s1 + $0x128] sm:$0xff]
    %v62 = vld [vmem:[%s1 + $0x130] sm:$0xff]
    %v63 = vld [vmem:[%s1 + $0x138] sm:$0xff]
    %v64 = vld [vmem:[%s1 + $0x140] sm:$0xff]
    %v65 = vld [vmem:[%s1 + $0x148] sm:$0xff]
    %v66 = vld [vmem:[%s1 + $0x150] sm:$0xff]
    %v67 = vld [vmem:[%s1 + $0x158] sm:$0xff]
    %v68 = vld [vmem:[%s1 + $0x160] sm:$0xff]
    %v69 = vld [vmem:[%s1 + $0x168] sm:$0xff]
    %v70 = vld [vmem:[%s1 + $0x170] sm:$0xff]
    %v71 = vld [vmem:[%s1 + $0x178] sm:$0xff]
    %v72 = vld [vmem:[%s1 + $0x180] sm:$0xff]
    %v73 = vld [vmem:[%s1 + $0x188] sm:$0xff]
    %v74 = vld [vmem:[%s1 + $0x190] sm:$0xff]
    %v75 = vld [vmem:[%s1 + $0x198] sm:$0xff]
    %v76 = vld [vmem:[%s1 + $0x1a0] sm:$0xff]
    %v77 = vld [vmem:[%s1 + $0x1a8] sm:$0xff]
    %v78 = vld [vmem:[%s1 + $0x1b0] sm:$0xff]
    %v79 = vld [vmem:[%s1 + $0x1b8] sm:$0xff]
    %v80 = vld [vmem:[%s1 + $0x1c0] sm:$0xff]
    %v81 = vld [vmem:[%s1 + $0x1c8] sm:$0xff]
    %v82 = vld [vmem:[%s1 + $0x1d0] sm:$0xff]
    %v83 = vld [vmem:[%s1 + $0x1d8] sm:$0xff]
    %v84 = vld [vmem:[%s1 + $0x1e0] sm:$0xff]
    %v85 = vld [vmem:[%s1 + $0x1e8] sm:$0xff]
    %v86 = vld [vmem:[%s1 + $0x1f0] sm:$0xff]
    %v87 = vld [vmem:[%s1 + $0x1f8] sm:$0xff]
    %v88 = vld [vmem:[%s1 + $0x200] sm:$0xff]
    %v89 = vld [vmem:[%s1 + $0x208] sm:$0xff]
    %v90 = vld [vmem:[%s1 + $0x210] sm:$0xff]
    %v91 = vld [vmem:[%s1 + $0x218] sm:$0xff]
    %v92 = vld [vmem:[%s1 + $0x220] sm:$0xff]
    %v93 = vld [vmem:[%s1 + $0x228] sm:$0xff]
    %v94 = vld [vmem:[%s1 + $0x230] sm:$0xff]
    %v95 = vld [vmem:[%s1 + $0x238] sm:$0xff]
    %v96 = vld [vmem:[%s1 + $0x240] sm:$0xf]
    %v97 = vld [vmem:[%s1 + $0x248] sm:$0xf]
    %v98 = vld [vmem:[%s2] sm:$0x3]
    %v100 = vlaneseq
    %v101 = vshrl.u32 %v100, 7
    %v102 = vsub.s32 0, %v101
    %v103 = vrot.slane %v98, %v102
    %v104 = vlaneseq
    %v105 = vshrl.u32 %v104, 7
    %v106 = vsub.s32 1, %v105
    %v107 = vrot.slane %v98, %v106
    %vm110 = vcmask 293888
    %v112 = vsel %vm110, %v23, 0
    %vm114 = vcmask 1043456
    %v116 = vsel %vm114, %v96, 0
    %v119 = vsel %vm114, %v97, 0
    %121 = vmatprep.subr.mxu0 %v55
    %122 = vmatpush1.msra.mxu0 %v54
    %123 = vmatprep.subr.mxu0 %v53
    %124 = vmatpush1.msra.mxu0 %v52
    %125 = vmatprep.subr.mxu0 %v51
    %126 = vmatpush1.msra.mxu0 %v50
    %127 = vmatprep.subr.mxu0 %v49
    %128 = vmatpush1.msra.mxu0 %v48
    %129 = vmatprep.subr.mxu0 %v47
    %130 = vmatpush1.msra.mxu0 %v46
    %131 = vmatprep.subr.mxu0 %v45
    %132 = vmatpush1.msra.mxu0 %v44
    %133 = vmatprep.subr.mxu0 %v43
    %134 = vmatpush1.msra.mxu0 %v42
    %135 = vmatprep.subr.mxu0 %v41
    %136 = vmatpush1.msra.mxu0 %v40
    %137 = vmatprep.subr.mxu0 %v39
    %138 = vmatpush1.msra.mxu0 %v38
    %139 = vmatprep.subr.mxu0 %v37
    %140 = vmatpush1.msra.mxu0 %v36
    %141 = vmatprep.subr.mxu0 %v35
    %142 = vmatpush1.msra.mxu0 %v34
    %143 = vmatprep.subr.mxu0 %v33
    %144 = vmatpush1.msra.mxu0 %v32
    %145 = vmatprep.subr.mxu0 %v31
    %146 = vmatpush1.msra.mxu0 %v30
    %147 = vmatprep.subr.mxu0 %v29
    %148 = vmatpush1.msra.mxu0 %v28
    %149 = vmatprep.subr.mxu0 %v27
    %150 = vmatpush1.msra.mxu0 %v26
    %151 = vmatprep.subr.mxu0 %v25
    %152 = vmatpush1.msra.mxu0 %v24
    %153 = vmatprep.subr.mxu0 %v87
    %154 = vmatpush2.msra.mxu0 %v86
    %155 = vmatprep.subr.mxu0 %v85
    %156 = vmatpush2.msra.mxu0 %v84
    %157 = vmatprep.subr.mxu0 %v83
    %158 = vmatpush2.msra.mxu0 %v82
    %159 = vmatprep.subr.mxu0 %v81
    %160 = vmatpush2.msra.mxu0 %v80
    %161 = vmatprep.subr.mxu0 %v79
    %162 = vmatpush2.msra.mxu0 %v78
    %163 = vmatprep.subr.mxu0 %v77
    %164 = vmatpush2.msra.mxu0 %v76
    %165 = vmatprep.subr.mxu0 %v75
    %166 = vmatpush2.msra.mxu0 %v74
    %167 = vmatprep.subr.mxu0 %v73
    %168 = vmatpush2.msra.mxu0 %v72
    %169 = vmatprep.subr.mxu0 %v71
    %170 = vmatpush2.msra.mxu0 %v70
    %171 = vmatprep.subr.mxu0 %v69
    %172 = vmatpush2.msra.mxu0 %v68
    %173 = vmatprep.subr.mxu0 %v67
    %174 = vmatpush2.msra.mxu0 %v66
    %175 = vmatprep.subr.mxu0 %v65
    %176 = vmatpush2.msra.mxu0 %v64
    %177 = vmatprep.subr.mxu0 %v63
    %178 = vmatpush2.msra.mxu0 %v62
    %179 = vmatprep.subr.mxu0 %v61
    %180 = vmatpush2.msra.mxu0 %v60
    %181 = vmatprep.subr.mxu0 %v59
    %182 = vmatpush2.msra.mxu0 %v58
    %183 = vmatprep.subr.mxu0 %v57
    %184 = vmatpush2.msra.mxu0 %v56
    %185 = vmatprep.mubr.f32.mxu0 %v22
    %186 = vmatmul.mubr.f32.gmra.mxu0 %v21
    %v187 = vpop.f32.mrf.mxu0
    %v188 = vadd.f32 %v103, %v187
    %v189 = vpop.f32.mrf.mxu0
    %v190 = vadd.f32 %v107, %v189
    %191 = vdwg.mxu0
    %192 = vmatprep.subr.mxu0 0.0
    %193 = vmatpush1.msra.mxu0 0.0
    %194 = vmatprep.subr.mxu0 0.0
    %195 = vmatpush1.msra.mxu0 0.0
    %196 = vmatprep.subr.mxu0 0.0
    %197 = vmatpush1.msra.mxu0 0.0
    %198 = vmatprep.subr.mxu0 0.0
    %199 = vmatpush1.msra.mxu0 0.0
    %200 = vmatprep.subr.mxu0 0.0
    %201 = vmatpush1.msra.mxu0 0.0
    %202 = vmatprep.subr.mxu0 0.0
    %203 = vmatpush1.msra.mxu0 0.0
    %204 = vmatprep.subr.mxu0 0.0
    %205 = vmatpush1.msra.mxu0 0.0
    %206 = vmatprep.subr.mxu0 0.0
    %207 = vmatpush1.msra.mxu0 0.0
    %208 = vmatprep.subr.mxu0 0.0
    %209 = vmatpush1.msra.mxu0 0.0
    %210 = vmatprep.subr.mxu0 0.0
    %211 = vmatpush1.msra.mxu0 0.0
    %212 = vmatprep.subr.mxu0 0.0
    %213 = vmatpush1.msra.mxu0 0.0
    %214 = vmatprep.subr.mxu0 %v119
    %215 = vmatpush1.msra.mxu0 %v116
    %216 = vmatprep.subr.mxu0 %v95
    %217 = vmatpush1.msra.mxu0 %v94
    %218 = vmatprep.subr.mxu0 %v93
    %219 = vmatpush1.msra.mxu0 %v92
    %220 = vmatprep.subr.mxu0 %v91
    %221 = vmatpush1.msra.mxu0 %v90
    %222 = vmatprep.subr.mxu0 %v89
    %223 = vmatpush1.msra.mxu0 %v88
    %224 = vmatprep.subr.mxu0 0.0
    %225 = vmatpush2.msra.mxu0 0.0
    %226 = vmatprep.subr.mxu0 0.0
    %227 = vmatpush2.msra.mxu0 0.0
    %228 = vmatprep.subr.mxu0 0.0
    %229 = vmatpush2.msra.mxu0 0.0
    %230 = vmatprep.subr.mxu0 0.0
    %231 = vmatpush2.msra.mxu0 0.0
    %232 = vmatprep.subr.mxu0 0.0
    %233 = vmatpush2.msra.mxu0 0.0
    %234 = vmatprep.subr.mxu0 0.0
    %235 = vmatpush2.msra.mxu0 0.0
    %236 = vmatprep.subr.mxu0 0.0
    %237 = vmatpush2.msra.mxu0 0.0
    %238 = vmatprep.subr.mxu0 0.0
    %239 = vmatpush2.msra.mxu0 0.0
    %240 = vmatprep.subr.mxu0 0.0
    %241 = vmatpush2.msra.mxu0 0.0
    %242 = vmatprep.subr.mxu0 0.0
    %243 = vmatpush2.msra.mxu0 0.0
    %244 = vmatprep.subr.mxu0 0.0
    %245 = vmatpush2.msra.mxu0 0.0
    %246 = vmatprep.subr.mxu0 0.0
    %247 = vmatpush2.msra.mxu0 0.0
    %248 = vmatprep.subr.mxu0 0.0
    %249 = vmatpush2.msra.mxu0 0.0
    %250 = vmatprep.subr.mxu0 0.0
    %251 = vmatpush2.msra.mxu0 0.0
    %252 = vmatprep.subr.mxu0 0.0
    %253 = vmatpush2.msra.mxu0 0.0
    %254 = vmatprep.subr.mxu0 0.0
    %255 = vmatpush2.msra.mxu0 0.0
    %256 = vmatprep.mubr.f32.mxu0 0.0
    %257 = vmatmul.mubr.f32.gmra.mxu0 %v112
    %v258 = vpop.f32.mrf.mxu0
    %v259 = vadd.f32 %v188, %v258
    %v260 = vpop.f32.mrf.mxu0
    %v261 = vadd.f32 %v190, %v260
    %262 = vdwg.mxu0
    %v263 = vld [vmem:[%s3] sm:$0xff]
    %v264 = vld [vmem:[%s3 + $0x8] sm:$0xff]
    %v265 = vld [vmem:[%s3 + $0x10] sm:$0xff]
    %v266 = vld [vmem:[%s3 + $0x18] sm:$0xff]
    %v267 = vld [vmem:[%s3 + $0x20] sm:$0xff]
    %v268 = vld [vmem:[%s3 + $0x28] sm:$0xff]
    %v269 = vld [vmem:[%s3 + $0x30] sm:$0xff]
    %v270 = vld [vmem:[%s3 + $0x38] sm:$0xff]
    %v271 = vld [vmem:[%s3 + $0x40] sm:$0xff]
    %v272 = vld [vmem:[%s3 + $0x48] sm:$0xff]
    %v273 = vld [vmem:[%s3 + $0x50] sm:$0xff]
    %v274 = vld [vmem:[%s3 + $0x58] sm:$0xff]
    %v275 = vld [vmem:[%s3 + $0x60] sm:$0xff]
    %v276 = vld [vmem:[%s3 + $0x68] sm:$0xff]
    %v277 = vld [vmem:[%s3 + $0x70] sm:$0xff]
    %v278 = vld [vmem:[%s3 + $0x78] sm:$0xff]
    %v279 = vld [vmem:[%s3 + $0x80] sm:$0xff]
    %v280 = vld [vmem:[%s3 + $0x88] sm:$0xff]
    %v281 = vld [vmem:[%s3 + $0x90] sm:$0xff]
    %v282 = vld [vmem:[%s3 + $0x98] sm:$0xff]
    %v283 = vld [vmem:[%s3 + $0xa0] sm:$0xff]
    %v284 = vld [vmem:[%s3 + $0xa8] sm:$0xff]
    %v285 = vld [vmem:[%s3 + $0xb0] sm:$0xff]
    %v286 = vld [vmem:[%s3 + $0xb8] sm:$0xff]
    %v287 = vld [vmem:[%s3 + $0xc0] sm:$0xff]
    %v288 = vld [vmem:[%s3 + $0xc8] sm:$0xff]
    %v289 = vld [vmem:[%s3 + $0xd0] sm:$0xff]
    %v290 = vld [vmem:[%s3 + $0xd8] sm:$0xff]
    %v291 = vld [vmem:[%s3 + $0xe0] sm:$0xff]
    %v292 = vld [vmem:[%s3 + $0xe8] sm:$0xff]
    %v293 = vld [vmem:[%s3 + $0xf0] sm:$0xff]
    %v294 = vld [vmem:[%s3 + $0xf8] sm:$0xff]
    %v295 = vld [vmem:[%s3 + $0x100] sm:$0xff]
    %v296 = vld [vmem:[%s3 + $0x108] sm:$0xff]
    %v297 = vld [vmem:[%s3 + $0x110] sm:$0xff]
    %v298 = vld [vmem:[%s3 + $0x118] sm:$0xff]
    %v299 = vld [vmem:[%s3 + $0x120] sm:$0xff]
    %v300 = vld [vmem:[%s3 + $0x128] sm:$0xff]
    %v301 = vld [vmem:[%s3 + $0x130] sm:$0xff]
    %v302 = vld [vmem:[%s3 + $0x138] sm:$0xff]
    %v303 = vld [vmem:[%s3 + $0x140] sm:$0xff]
    %v304 = vld [vmem:[%s3 + $0x148] sm:$0xff]
    %v305 = vld [vmem:[%s3 + $0x150] sm:$0xff]
    %v306 = vld [vmem:[%s3 + $0x158] sm:$0xff]
    %v307 = vld [vmem:[%s3 + $0x160] sm:$0xff]
    %v308 = vld [vmem:[%s3 + $0x168] sm:$0xff]
    %v309 = vld [vmem:[%s3 + $0x170] sm:$0xff]
    %v310 = vld [vmem:[%s3 + $0x178] sm:$0xff]
    %v311 = vld [vmem:[%s3 + $0x180] sm:$0xff]
    %v312 = vld [vmem:[%s3 + $0x188] sm:$0xff]
    %v313 = vld [vmem:[%s3 + $0x190] sm:$0xff]
    %v314 = vld [vmem:[%s3 + $0x198] sm:$0xff]
    %v315 = vld [vmem:[%s3 + $0x1a0] sm:$0xff]
    %v316 = vld [vmem:[%s3 + $0x1a8] sm:$0xff]
    %v317 = vld [vmem:[%s3 + $0x1b0] sm:$0xff]
    %v318 = vld [vmem:[%s3 + $0x1b8] sm:$0xff]
    %v319 = vld [vmem:[%s3 + $0x1c0] sm:$0xff]
    %v320 = vld [vmem:[%s3 + $0x1c8] sm:$0xff]
    %v321 = vld [vmem:[%s3 + $0x1d0] sm:$0xff]
    %v322 = vld [vmem:[%s3 + $0x1d8] sm:$0xff]
    %v323 = vld [vmem:[%s3 + $0x1e0] sm:$0xff]
    %v324 = vld [vmem:[%s3 + $0x1e8] sm:$0xff]
    %v325 = vld [vmem:[%s3 + $0x1f0] sm:$0xff]
    %v326 = vld [vmem:[%s3 + $0x1f8] sm:$0xff]
    %v327 = vld [vmem:[%s3 + $0x200] sm:$0xff]
    %v328 = vld [vmem:[%s3 + $0x208] sm:$0xff]
    %v329 = vld [vmem:[%s3 + $0x210] sm:$0xff]
    %v330 = vld [vmem:[%s3 + $0x218] sm:$0xff]
    %v331 = vld [vmem:[%s3 + $0x220] sm:$0xff]
    %v332 = vld [vmem:[%s3 + $0x228] sm:$0xff]
    %v333 = vld [vmem:[%s3 + $0x230] sm:$0xff]
    %v334 = vld [vmem:[%s3 + $0x238] sm:$0xff]
    %v335 = vld [vmem:[%s3 + $0x240] sm:$0xff]
    %v336 = vld [vmem:[%s3 + $0x248] sm:$0xff]
    %v337 = vld [vmem:[%s3 + $0x250] sm:$0xff]
    %v338 = vld [vmem:[%s3 + $0x258] sm:$0xff]
    %v339 = vld [vmem:[%s3 + $0x260] sm:$0xff]
    %v340 = vld [vmem:[%s3 + $0x268] sm:$0xff]
    %v341 = vld [vmem:[%s3 + $0x270] sm:$0xff]
    %v342 = vld [vmem:[%s3 + $0x278] sm:$0xff]
    %v343 = vld [vmem:[%s3 + $0x280] sm:$0xff]
    %v344 = vld [vmem:[%s3 + $0x288] sm:$0xff]
    %v345 = vld [vmem:[%s3 + $0x290] sm:$0xff]
    %v346 = vld [vmem:[%s3 + $0x298] sm:$0xff]
    %v347 = vld [vmem:[%s3 + $0x2a0] sm:$0xff]
    %v348 = vld [vmem:[%s3 + $0x2a8] sm:$0xff]
    %v349 = vld [vmem:[%s3 + $0x2b0] sm:$0xff]
    %v350 = vld [vmem:[%s3 + $0x2b8] sm:$0xff]
    %v351 = vld [vmem:[%s3 + $0x2c0] sm:$0xff]
    %v352 = vld [vmem:[%s3 + $0x2c8] sm:$0xff]
    %v353 = vld [vmem:[%s3 + $0x2d0] sm:$0xff]
    %v354 = vld [vmem:[%s3 + $0x2d8] sm:$0xff]
    %v355 = vld [vmem:[%s3 + $0x2e0] sm:$0xff]
    %v356 = vld [vmem:[%s3 + $0x2e8] sm:$0xff]
    %v357 = vld [vmem:[%s3 + $0x2f0] sm:$0xff]
    %v358 = vld [vmem:[%s3 + $0x2f8] sm:$0xff]
    %v359 = vld [vmem:[%s4] sm:$0x7]
    %v361 = vlaneseq
    %v362 = vshrl.u32 %v361, 7
    %v363 = vsub.s32 0, %v362
    %v364 = vrot.slane %v359, %v363
    %v365 = vlaneseq
    %v366 = vshrl.u32 %v365, 7
    %v367 = vsub.s32 1, %v366
    %v368 = vrot.slane %v359, %v367
    %v369 = vlaneseq
    %v370 = vshrl.u32 %v369, 7
    %v371 = vsub.s32 2, %v370
    %v372 = vrot.slane %v359, %v371
    %376 = vmatprep.subr.mxu0 %v309
    %377 = vmatpush1.msra.mxu0 %v308
    %378 = vmatprep.subr.mxu0 %v306
    %379 = vmatpush1.msra.mxu0 %v305
    %380 = vmatprep.subr.mxu0 %v303
    %381 = vmatpush1.msra.mxu0 %v302
    %382 = vmatprep.subr.mxu0 %v300
    %383 = vmatpush1.msra.mxu0 %v299
    %384 = vmatprep.subr.mxu0 %v297
    %385 = vmatpush1.msra.mxu0 %v296
    %386 = vmatprep.subr.mxu0 %v294
    %387 = vmatpush1.msra.mxu0 %v293
    %388 = vmatprep.subr.mxu0 %v291
    %389 = vmatpush1.msra.mxu0 %v290
    %390 = vmatprep.subr.mxu0 %v288
    %391 = vmatpush1.msra.mxu0 %v287
    %392 = vmatprep.subr.mxu0 %v285
    %393 = vmatpush1.msra.mxu0 %v284
    %394 = vmatprep.subr.mxu0 %v282
    %395 = vmatpush1.msra.mxu0 %v281
    %396 = vmatprep.subr.mxu0 %v279
    %397 = vmatpush1.msra.mxu0 %v278
    %398 = vmatprep.subr.mxu0 %v276
    %399 = vmatpush1.msra.mxu0 %v275
    %400 = vmatprep.subr.mxu0 %v273
    %401 = vmatpush1.msra.mxu0 %v272
    %402 = vmatprep.subr.mxu0 %v270
    %403 = vmatpush1.msra.mxu0 %v269
    %404 = vmatprep.subr.mxu0 %v267
    %405 = vmatpush1.msra.mxu0 %v266
    %406 = vmatprep.subr.mxu0 %v264
    %407 = vmatpush1.msra.mxu0 %v263
    %408 = vmatprep.subr.mxu0 %v357
    %409 = vmatpush2.msra.mxu0 %v356
    %410 = vmatprep.subr.mxu0 %v354
    %411 = vmatpush2.msra.mxu0 %v353
    %412 = vmatprep.subr.mxu0 %v351
    %413 = vmatpush2.msra.mxu0 %v350
    %414 = vmatprep.subr.mxu0 %v348
    %415 = vmatpush2.msra.mxu0 %v347
    %416 = vmatprep.subr.mxu0 %v345
    %417 = vmatpush2.msra.mxu0 %v344
    %418 = vmatprep.subr.mxu0 %v342
    %419 = vmatpush2.msra.mxu0 %v341
    %420 = vmatprep.subr.mxu0 %v339
    %421 = vmatpush2.msra.mxu0 %v338
    %422 = vmatprep.subr.mxu0 %v336
    %423 = vmatpush2.msra.mxu0 %v335
    %424 = vmatprep.subr.mxu0 %v333
    %425 = vmatpush2.msra.mxu0 %v332
    %426 = vmatprep.subr.mxu0 %v330
    %427 = vmatpush2.msra.mxu0 %v329
    %428 = vmatprep.subr.mxu0 %v327
    %429 = vmatpush2.msra.mxu0 %v326
    %430 = vmatprep.subr.mxu0 %v324
    %431 = vmatpush2.msra.mxu0 %v323
    %432 = vmatprep.subr.mxu0 %v321
    %433 = vmatpush2.msra.mxu0 %v320
    %434 = vmatprep.subr.mxu0 %v318
    %435 = vmatpush2.msra.mxu0 %v317
    %436 = vmatprep.subr.mxu0 %v315
    %437 = vmatpush2.msra.mxu0 %v314
    %438 = vmatprep.subr.mxu0 %v312
    %439 = vmatpush2.msra.mxu0 %v311
    %440 = vmatprep.mubr.f32.mxu0 %v261
    %441 = vmatmul.mubr.f32.gmra.mxu0 %v259
    %v442 = vpop.f32.mrf.mxu0
    %v443 = vadd.f32 %v364, %v442
    %v444 = vpop.f32.mrf.mxu0
    %v445 = vadd.f32 %v368, %v444
    %446 = vdwg.mxu0
    %447 = vmatprep.subr.mxu0 0.0
    %448 = vmatpush1.msra.mxu0 %v310
    %449 = vmatprep.subr.mxu0 0.0
    %450 = vmatpush1.msra.mxu0 %v307
    %451 = vmatprep.subr.mxu0 0.0
    %452 = vmatpush1.msra.mxu0 %v304
    %453 = vmatprep.subr.mxu0 0.0
    %454 = vmatpush1.msra.mxu0 %v301
    %455 = vmatprep.subr.mxu0 0.0
    %456 = vmatpush1.msra.mxu0 %v298
    %457 = vmatprep.subr.mxu0 0.0
    %458 = vmatpush1.msra.mxu0 %v295
    %459 = vmatprep.subr.mxu0 0.0
    %460 = vmatpush1.msra.mxu0 %v292
    %461 = vmatprep.subr.mxu0 0.0
    %462 = vmatpush1.msra.mxu0 %v289
    %463 = vmatprep.subr.mxu0 0.0
    %464 = vmatpush1.msra.mxu0 %v286
    %465 = vmatprep.subr.mxu0 0.0
    %466 = vmatpush1.msra.mxu0 %v283
    %467 = vmatprep.subr.mxu0 0.0
    %468 = vmatpush1.msra.mxu0 %v280
    %469 = vmatprep.subr.mxu0 0.0
    %470 = vmatpush1.msra.mxu0 %v277
    %471 = vmatprep.subr.mxu0 0.0
    %472 = vmatpush1.msra.mxu0 %v274
    %473 = vmatprep.subr.mxu0 0.0
    %474 = vmatpush1.msra.mxu0 %v271
    %475 = vmatprep.subr.mxu0 0.0
    %476 = vmatpush1.msra.mxu0 %v268
    %477 = vmatprep.subr.mxu0 0.0
    %478 = vmatpush1.msra.mxu0 %v265
    %479 = vmatprep.subr.mxu0 0.0
    %480 = vmatpush2.msra.mxu0 %v358
    %481 = vmatprep.subr.mxu0 0.0
    %482 = vmatpush2.msra.mxu0 %v355
    %483 = vmatprep.subr.mxu0 0.0
    %484 = vmatpush2.msra.mxu0 %v352
    %485 = vmatprep.subr.mxu0 0.0
    %486 = vmatpush2.msra.mxu0 %v349
    %487 = vmatprep.subr.mxu0 0.0
    %488 = vmatpush2.msra.mxu0 %v346
    %489 = vmatprep.subr.mxu0 0.0
    %490 = vmatpush2.msra.mxu0 %v343
    %491 = vmatprep.subr.mxu0 0.0
    %492 = vmatpush2.msra.mxu0 %v340
    %493 = vmatprep.subr.mxu0 0.0
    %494 = vmatpush2.msra.mxu0 %v337
    %495 = vmatprep.subr.mxu0 0.0
    %496 = vmatpush2.msra.mxu0 %v334
    %497 = vmatprep.subr.mxu0 0.0
    %498 = vmatpush2.msra.mxu0 %v331
    %499 = vmatprep.subr.mxu0 0.0
    %500 = vmatpush2.msra.mxu0 %v328
    %501 = vmatprep.subr.mxu0 0.0
    %502 = vmatpush2.msra.mxu0 %v325
    %503 = vmatprep.subr.mxu0 0.0
    %504 = vmatpush2.msra.mxu0 %v322
    %505 = vmatprep.subr.mxu0 0.0
    %506 = vmatpush2.msra.mxu0 %v319
    %507 = vmatprep.subr.mxu0 0.0
    %508 = vmatpush2.msra.mxu0 %v316
    %509 = vmatprep.subr.mxu0 0.0
    %510 = vmatpush2.msra.mxu0 %v313
    %511 = vmatprep.mubr.f32.mxu0 %v261
    %512 = vmatmul.mubr.f32.gmra.mxu0 %v259
    %v513 = vpop.f32.mrf.mxu0
    %v514 = vadd.f32 %v372, %v513
    %v515 = vpop.f32.mrf.mxu0
    %516 = vdwg.mxu0
    %517 = vst [vmem:[#allocation2] sm:$0xff] %v443
    %518 = vst [vmem:[#allocation2 + $0x8] sm:$0xff] %v445
    %vm519 = vcmask 261120
    %520 = vst.msk [vmem:[#allocation2 + $0x10] sm:$0xff] %vm519, %v514
    // Predicated region
    $region22: #{tpu_custom_call.1} parent=1 // pred_check
      _
    $region23: #{tpu_custom_call.1} parent=1 // pred_check_branch
      %522 = sbr.rel (0) target = $region25
    $region24: #{tpu_custom_call.1} parent=1 // pred_region
      %s524 = ssub.s32 384, 384
      %525 = vsyncadd [#allocation3], %s524
      %s527 = sshll.u32 [#allocation2], 4
      %s528 = int_to_ptr.vmem [resolvable:$true] %s527
      %530 = dma.vmem_to_hbm [thread:$0]  %s528, 384, %s5, [#allocation3]
    $region25: #{tpu_custom_call.1} parent=1 // pred_fallthru
      _
    // Predicated region
    $region26: #{tpu_custom_call.1} parent=1 // pred_check
      _
    $region27: #{tpu_custom_call.1} parent=1 // pred_check_branch
      %532 = sbr.rel (0) target = $region29
    $region28: #{tpu_custom_call.1} parent=1 // pred_region
      %533 = dma.done [#allocation3], 384
    $region29: #{tpu_custom_call.1} parent=1 // pred_fallthru
      _
    %534 = vsyncpa [#allocation3], 1

</llo_original>
